<compile_context>
chip_gen: v7x
topology: tpu7x:2x2x1
jax: 0.10.0
libtpu: 0.0.40
codegen_flags: <defaults>
</compile_context>

<pallas_src>
import functools
import math

import jax
import jax.numpy as jnp
from jax.experimental import pallas as pl
from jax.experimental.pallas import tpu as pltpu

K_HOPS = 3          # args.K for the power() score layer
SUB = 8             # sublane replication of the lane-dense score row
TILE_CAP = 2048     # A tile cap: 2048x2048 bf16 = 8 MiB (fits v7x budgets)
ALIGN = 512         # N padded to a multiple of this -> chosen tile >= 512
TILE_K = 64         # pooled rows gathered/gated per grid step


# ---------------------------------------------------------------- helpers ----
def _round_up(v, m):
    return ((v + m - 1) // m) * m


def _choose_grid(n, cap=TILE_CAP, align=ALIGN):
    """Pad n so that a >=align, <=cap, multiple-of-128 tile divides it."""
    n_pad = _round_up(max(n, align), align)
    tile = min(cap, n_pad)
    while n_pad % tile:
        tile -= 128
    return n_pad, tile


def _vmem_limit_bytes():
    """Per-generation scoped-VMEM limit: ~48 MiB on v7x, ~100 MiB on v5e/v6e."""
    try:
        phys = pltpu.get_tpu_info().vmem_capacity_bytes
    except Exception:
        phys = 64 * 1024 * 1024          # conservative (v7x-sized) fallback
    return int(min(phys - 16 * 1024 * 1024, 100 * 1024 * 1024))


# ---------------------------------------------------------------- kernels ----
def _init_score_kernel(w_ref, xt_ref, b_ref, s_ref):
    # Linear(in_channels, 1) emitted lane-dense: s = w_rep @ x^T + b.
    # w_rep is (SUB, C) (row replicated), x^T tile is (C, tile) -> (SUB, tile).
    s_ref[...] = (
        jnp.dot(w_ref[...], xt_ref[...], preferred_element_type=jnp.float32)
        + b_ref[0]
    )


def _prop_kernel(s_ref, a_ref, out_ref, acc_ref, *, tile_rows):
    # One hop of s_new = s @ A for one (col-tile, row-tile) of A.
    # Grid = (col tiles ["parallel"], contraction row tiles ["arbitrary", last]).
    # s_ref is the FULL (SUB, n_pad) score row, resident in VMEM.
    r = pl.program_id(1)

    @pl.when(r == 0)
    def _init():
        acc_ref[...] = jnp.zeros_like(acc_ref)

    off = pl.multiple_of(r * tile_rows, 128)
    lhs = s_ref[:, pl.ds(off, tile_rows)].astype(jnp.bfloat16)   # tiny cast
    acc_ref[...] += jnp.dot(lhs, a_ref[...],                     # bf16 MXU
                            preferred_element_type=jnp.float32)

    @pl.when(r == pl.num_programs(1) - 1)
    def _done():
        out_ref[...] = acc_ref[...]


def _gate_kernel(perm_ref, sp_ref, x_hbm_ref, out_ref, xbuf, sems):
    # out[i] = x[perm[i]] * tanh(score[perm[i]]); the x[perm] gather is fused
    # here via manual per-row DMAs from HBM driven by the SMEM perm table.
    # All TILE_K row DMAs are issued before the first wait so they overlap.
    # TODO(synk): cross-step double buffering of the gathered rows was not
    # added because it would require a sequential ("arbitrary") grid axis,
    # conflicting with "parallel" megacore sharding of the independent blocks.
    base = pl.program_id(0) * TILE_K
    copies = []
    for r in range(TILE_K):                    # static unroll
        cp = pltpu.make_async_copy(
            x_hbm_ref.at[perm_ref[base + r]], xbuf.at[r], sems.at[r])
        cp.start()
        copies.append(cp)
    for cp in copies:
        cp.wait()
    out_ref[...] = xbuf[...] * jnp.tanh(sp_ref[...])


# --------------------------------------------------------------- wrappers ----
def init_score_row(w_rep, xt_pad, b1, tile):
    c, n_pad = xt_pad.shape
    return pl.pallas_call(
        _init_score_kernel,
        out_shape=jax.ShapeDtypeStruct((SUB, n_pad), jnp.float32),
        grid_spec=pltpu.PrefetchScalarGridSpec(
            num_scalar_prefetch=0,
            grid=(n_pad // tile,),
            in_specs=[
                pl.BlockSpec((SUB, c), lambda i: (0, 0)),
                pl.BlockSpec((c, tile), lambda i: (0, i)),
                pl.BlockSpec(memory_space=pltpu.MemorySpace.SMEM),  # bias
            ],
            out_specs=pl.BlockSpec((SUB, tile), lambda i: (0, i)),
        ),
        compiler_params=pltpu.CompilerParams(
            dimension_semantics=("parallel",)),
    )(w_rep, xt_pad, b1)


def propagate_hop(s_row, a_bf16, tile):
    n_pad = a_bf16.shape[0]
    n_tiles = n_pad // tile
    if n_tiles >= 4:
        # deeper pipelining of the A stream once there are enough tiles
        a_spec = pl.BlockSpec((tile, tile), lambda j, r: (r, j),
                              pipeline_mode=pl.Buffered(3))
    else:
        a_spec = pl.BlockSpec((tile, tile), lambda j, r: (r, j))
    return pl.pallas_call(
        functools.partial(_prop_kernel, tile_rows=tile),
        out_shape=jax.ShapeDtypeStruct((SUB, n_pad), jnp.float32),
        grid_spec=pltpu.PrefetchScalarGridSpec(
            num_scalar_prefetch=0,
            grid=(n_tiles, n_tiles),
            in_specs=[
                pl.BlockSpec((SUB, n_pad), lambda j, r: (0, 0)),  # resident s
                a_spec,                                           # bf16 A tile
            ],
            out_specs=pl.BlockSpec((SUB, tile), lambda j, r: (0, j)),
            scratch_shapes=[pltpu.VMEM((SUB, tile), jnp.float32)],
        ),
        compiler_params=pltpu.CompilerParams(
            dimension_semantics=("parallel", "arbitrary"),
            vmem_limit_bytes=_vmem_limit_bytes(),
        ),
    )(s_row, a_bf16)


def gate(perm_pad, s_perm_col, x):
    k_pad = perm_pad.shape[0]
    _, c = x.shape
    return pl.pallas_call(
        _gate_kernel,
        out_shape=jax.ShapeDtypeStruct((k_pad, c), x.dtype),
        grid_spec=pltpu.PrefetchScalarGridSpec(
            num_scalar_prefetch=1,                  # perm -> SMEM
            grid=(k_pad // TILE_K,),
            in_specs=[
                pl.BlockSpec((TILE_K, 1), lambda i, perm: (i, 0)),
                pl.BlockSpec(memory_space=pl.ANY),  # x stays in HBM
            ],
            out_specs=pl.BlockSpec((TILE_K, c), lambda i, perm: (i, 0)),
            scratch_shapes=[
                pltpu.VMEM((TILE_K, c), x.dtype),
                pltpu.SemaphoreType.DMA((TILE_K,)),
            ],
        ),
        compiler_params=pltpu.CompilerParams(
            dimension_semantics=("parallel",)),
    )(perm_pad, s_perm_col, x)


# ------------------------------------------------------------------- glue ----
def build_norm_adj(edge_index, num_nodes, n_pad):
    """Dense GCN-normalized adjacency with self loops, zero-padded to n_pad."""
    # NOTE: duplicate edges collapse to 1.0 (unweighted GCN normalization).
    row, col = edge_index[0], edge_index[1]
    a = jnp.zeros((n_pad, n_pad), jnp.float32)
    a = a.at[row, col].set(1.0)
    diag = jnp.arange(num_nodes)
    a = a.at[diag, diag].set(1.0)
    deg = a.sum(axis=1)
    d_inv_sqrt = 1.0 / jnp.sqrt(jnp.maximum(deg, 1.0))
    d_inv_sqrt = jnp.where(deg > 0, d_inv_sqrt, 0.0)   # padded rows stay zero
    return d_inv_sqrt[:, None] * a * d_inv_sqrt[None, :]


def topk_perm(score, ratio):
    # batch is all zeros (single graph) -> top ceil(ratio * N) nodes globally.
    n = score.shape[0]
    k = int(math.ceil(ratio * n))
    _, perm = jax.lax.top_k(score, k)
    return perm


def filter_adj(edge_index, edge_attr, perm, num_nodes):
    node_mask = jnp.zeros((num_nodes,), jnp.bool_).at[perm].set(True)
    new_idx = jnp.full((num_nodes,), -1, jnp.int32).at[perm].set(
        jnp.arange(perm.shape[0], dtype=jnp.int32))
    row, col = edge_index[0], edge_index[1]
    emask = node_mask[row] & node_mask[col]
    row, col = row[emask], col[emask]  # eager boolean masking (dynamic size ok)
    edge_index_out = jnp.stack([new_idx[row], new_idx[col]], axis=0)
    edge_attr_out = None if edge_attr is None else edge_attr[emask]
    return edge_index_out, edge_attr_out


def power_pool_forward(params, x, edge_index, edge_attr=None, batch=None,
                       ratio=0.5):
    n, c = x.shape
    if batch is None:
        batch = jnp.zeros((n,), jnp.int32)
    w, b = params                                  # w: [C, 1], b: [1, 1]

    n_pad, tile = _choose_grid(n)                  # tile always >= 512

    x = x.astype(jnp.float32)
    xt_pad = jnp.zeros((c, n_pad), jnp.float32).at[:, :n].set(x.T)
    w_rep = jnp.tile(jnp.reshape(w.astype(jnp.float32), (1, c)), (SUB, 1))
    b1 = jnp.reshape(b.astype(jnp.float32), (1,))

    # TODO(synk): dense A stream is O(N^2) HBM bytes per hop; a CSR SpMV kernel
    # would be the long-term fix for large sparse graphs.
    # TODO(synk): on v7x, streaming A as fp8 (e4m3) would halve propagation
    # bandwidth; kept bf16 for cross-generation portability / precision.
    adj = build_norm_adj(edge_index, n, n_pad).astype(jnp.bfloat16)

    # 1) score = Linear(x)   (Pallas: MXU dot, lane-dense (SUB, n_pad) output)
    s_row = init_score_row(w_rep, xt_pad, b1, tile)

    # 2) score = A_hat^K score   (Pallas: K tiled, bandwidth-bound bf16 hops)
    # TODO(synk): exact `power(args.K, 1)` definition is not provided in the
    # source; implemented as K-step symmetric-normalized-adjacency propagation.
    for _ in range(K_HOPS):                        # K is static -> unrolled
        s_row = propagate_hop(s_row, adj, tile)
    score = s_row[0, :n]                           # [N]

    # 3) top-k selection + fused gather/gate
    perm = topk_perm(score, ratio)                 # [k]
    k = perm.shape[0]
    k_pad = _round_up(k, TILE_K)
    perm_pad = jnp.concatenate(
        [perm, jnp.zeros((k_pad - k,), perm.dtype)]).astype(jnp.int32)
    s_perm_col = score[perm_pad][:, None]          # [k_pad, 1]
    x_out = gate(perm_pad, s_perm_col, x)[:k]      # Pallas: x[perm]*tanh(s[perm])

    batch_out = batch[perm]
    edge_index_out, edge_attr_out = filter_adj(edge_index, edge_attr, perm, n)
    return x_out, edge_index_out, edge_attr_out, batch_out, perm


# ------------------------------------------------------------------- main ----
if __name__ == "__main__":
    key = jax.random.PRNGKey(0)
    N, C = 16, 32
    ratio = 0.5

    kx, kw, kb = jax.random.split(key, 3)
    x = jax.random.normal(kx, (N, C), jnp.float32)

    # Linear(in_channels, 1) params, deterministic (torch-style uniform init).
    bound = 1.0 / math.sqrt(C)
    w = jax.random.uniform(kw, (C, 1), jnp.float32, -bound, bound)
    b = jax.random.uniform(kb, (1, 1), jnp.float32, -bound, bound)

    # Deterministic edge set: ring graph + a few chords, symmetrized.
    src = jnp.concatenate([jnp.arange(N), jnp.array([0, 2, 4, 6, 8, 10])])
    dst = jnp.concatenate([(jnp.arange(N) + 1) % N,
                           jnp.array([8, 10, 12, 14, 0, 2])])
    edge_index = jnp.stack(
        [jnp.concatenate([src, dst]), jnp.concatenate([dst, src])], axis=0
    ).astype(jnp.int32)

    x_out, ei_out, ea_out, batch_out, perm = power_pool_forward(
        (w, b), x, edge_index, edge_attr=None, batch=None, ratio=ratio
    )
    jax.block_until_ready(x_out)
    jax.block_until_ready(ei_out)
    jax.block_until_ready(perm)
    print("KERNEL_OK")
</pallas_src>

<mosaic_0001>
module attributes {stable_mosaic.version = 11 : i64} {
  func.func @_init_score_kernel(%arg0: i32, %arg1: memref<8x32xf32, #tpu.memory_space<vmem>>, %arg2: memref<32x512xf32, #tpu.memory_space<vmem>>, %arg3: memref<1xf32, #tpu.memory_space<smem>>, %arg4: memref<8x512xf32, #tpu.memory_space<vmem>>) attributes {dimension_semantics = [#tpu.dimension_semantics<parallel>], iteration_bounds = array<i64: 1>, scalar_prefetch = 0 : i64, scratch_operands = 0 : i64, tpu.core_type = #tpu.core_type<tc>, window_params = [{pipeline_mode = #tpu.pipeline_mode<synchronous>, transform_indices = @transform_0, window_bounds = array<i64: 8, 32>}, {transform_indices = @transform_1, window_bounds = array<i64: 32, 512>}, {transform_indices = @transform_2, window_bounds = array<i64: 1>}, {transform_indices = @transform_3, window_bounds = array<i64: 8, 512>}]} {
    %c0 = arith.constant 0 : index
    %c0_0 = arith.constant 0 : index
    %0 = vector.load %arg1[%c0, %c0_0] : memref<8x32xf32, #tpu.memory_space<vmem>>, vector<8x32xf32>
    %c0_1 = arith.constant 0 : index
    %c0_2 = arith.constant 0 : index
    %1 = vector.load %arg2[%c0_1, %c0_2] : memref<32x512xf32, #tpu.memory_space<vmem>>, vector<32x512xf32>
    %cst = arith.constant dense<0.000000e+00> : vector<8x512xf32>
    %2 = tpu.matmul %0, %1, %cst {dimension_numbers = #tpu.dot_dimension_numbers<[1], [0], [0], [1], [0, 0, 1, 1], [], []>} : vector<8x32xf32>, vector<32x512xf32>, vector<8x512xf32> -> vector<8x512xf32>
    %c0_3 = arith.constant 0 : index
    %3 = memref.load %arg3[%c0_3] : memref<1xf32, #tpu.memory_space<smem>>
    %4 = vector.broadcast %3 : f32 to vector<8x512xf32>
    %5 = arith.addf %2, %4 : vector<8x512xf32>
    %c0_4 = arith.constant 0 : index
    %c0_5 = arith.constant 0 : index
    %6 = vector.load %arg4[%c0_4, %c0_5] : memref<8x512xf32, #tpu.memory_space<vmem>>, vector<8x512xf32>
    tpu.vector_store %arg4[%c0_4, %c0_5], %5 {strides = array<i32>} : memref<8x512xf32, #tpu.memory_space<vmem>>, vector<8x512xf32>,
    return
  }
  func.func @transform_0(%arg0: i32) -> (i32, i32) {
    %c0_i32 = arith.constant 0 : i32
    %c0_i32_0 = arith.constant 0 : i32
    %c0_i32_1 = arith.constant 0 : i32
    return %c0_i32, %c0_i32_0 : i32, i32
  }
  func.func @transform_1(%arg0: i32) -> (i32, i32) {
    %c0_i32 = arith.constant 0 : i32
    %c0_i32_0 = arith.constant 0 : i32
    return %c0_i32, %arg0 : i32, i32
  }
  func.func @transform_2(%arg0: i32) -> i32 {
    %c0_i32 = arith.constant 0 : i32
    %c0_i32_0 = arith.constant 0 : i32
    return %c0_i32 : i32
  }
  func.func @transform_3(%arg0: i32) -> (i32, i32) {
    %c0_i32 = arith.constant 0 : i32
    %c0_i32_0 = arith.constant 0 : i32
    return %c0_i32, %arg0 : i32, i32
  }
}

</mosaic_0001>

<llo_original>
// kernel: tpu_custom_call.1
$region0: #{tpu_custom_call.1}
  #allocation0 [shape = 'u32[]', space=smem, size = 0x4, offset = 0x4, fixed_abs, tag = 'smem constant byte address 0x4 - core index']
  #allocation1 [shape = 'u32[144,128]{1,0:T(1,128)}', space=vmem, size = 0x12000, scoped, tag = 'internal scratch']
  #allocation2 [shape = 'f32[1]{0:T(128)S(6)}', space=smem, size = 0x200, scoped, tag = 'scoped memory for tpu_custom_call.1']
  %s0 = inlined_call_operand.hbm [shape: f32[8,32], index: 0, kind: input, shape index: {}]
  %s1 = inlined_call_operand.hbm [shape: f32[32,512], index: 1, kind: input, shape index: {}]
  %s2 = inlined_call_operand.<no memory space> [shape: f32[1], index: 2, kind: input, shape index: {}]
  %s3 = inlined_call_operand.hbm [shape: f32[8,512], index: 3, kind: output, shape index: {}]
  %s4 = sld [smem:[#allocation0]]
  $region30: #{tpu_custom_call.1} parent=0
    _
  %s6 = ssub.s32 1, %s4
  %s7 = scalar_select 0, %s6, %s4
  %8 = sst [smem:[#allocation2]] %s2
  $region1: #{tpu_custom_call.1} parent=0
    #allocation3 [shape = 'u8[4096]{0}', space=vmem, size = 0x1000, scoped, tag = 'input window, operand 0, single buffered']
    #allocation4 [shape = 's32[1]{0}', space=sflag, size = 0x4, scoped, tag = 'scoped memory for tpu_custom_call.1']
    #allocation5 [shape = 's32[1]{0}', space=sflag, size = 0x4, scoped, tag = 'scoped memory for tpu_custom_call.1']
    #allocation6 [shape = 'u8[65536]{0}', space=vmem, size = 0x10000, scoped, tag = 'input window, operand 1, single buffered']
    #allocation7 [shape = 's32[1]{0}', space=sflag, size = 0x4, scoped, tag = 'scoped memory for tpu_custom_call.1']
    #allocation8 [shape = 'u8[16384]{0}', space=vmem, size = 0x4000, scoped, tag = 'output window, operand 0, single buffered']
    %9 = vsyncpa [#allocation4], 0
    %10 = vsyncpa [#allocation7], 0
    %11 = vsyncpa [#allocation5], 0
    // Predicated region
    $region2: #{tpu_custom_call.1} parent=1 // pred_check
      _
    $region3: #{tpu_custom_call.1} parent=1 // pred_check_branch
      %13 = sbr.rel (0) target = $region5
    $region4: #{tpu_custom_call.1} parent=1 // pred_region
      %s15 = ssub.s32 128, 128
      %16 = vsyncadd [#allocation4], %s15
      %s18 = sshll.u32 [#allocation3], 4
      %s19 = int_to_ptr.vmem [resolvable:$true] %s18
      %21 = dma.hbm_to_vmem [thread:$0]  %s0, 128, %s19, [#allocation4]
    $region5: #{tpu_custom_call.1} parent=1 // pred_fallthru
      _
    // Predicated region
    $region6: #{tpu_custom_call.1} parent=1 // pred_check
      _
    $region7: #{tpu_custom_call.1} parent=1 // pred_check_branch
      %23 = sbr.rel (0) target = $region9
    $region8: #{tpu_custom_call.1} parent=1 // pred_region
      %s25 = ssub.s32 2048, 2048
      %26 = vsyncadd [#allocation7], %s25
      %s27 = sshll.u32 [#allocation6], 4
      %s28 = int_to_ptr.vmem [resolvable:$true] %s27
      %33 = dma.hbm_to_vmem [thread:$0]  %s1, 2048, %s28, [#allocation7], 512, 512, 32
    $region9: #{tpu_custom_call.1} parent=1 // pred_fallthru
      _
    // Predicated region
    $region10: #{tpu_custom_call.1} parent=1 // pred_check
      _
    $region11: #{tpu_custom_call.1} parent=1 // pred_check_branch
      %35 = sbr.rel (0) target = $region13
    $region12: #{tpu_custom_call.1} parent=1 // pred_region
      _
    $region13: #{tpu_custom_call.1} parent=1 // pred_fallthru
      _
    // Predicated region
    $region14: #{tpu_custom_call.1} parent=1 // pred_check
      _
    $region15: #{tpu_custom_call.1} parent=1 // pred_check_branch
      %37 = sbr.rel (0) target = $region17
    $region16: #{tpu_custom_call.1} parent=1 // pred_region
      %38 = dma.done [#allocation4], 128
    $region17: #{tpu_custom_call.1} parent=1 // pred_fallthru
      _
    // Predicated region
    $region18: #{tpu_custom_call.1} parent=1 // pred_check
      _
    $region19: #{tpu_custom_call.1} parent=1 // pred_check_branch
      %40 = sbr.rel (0) target = $region21
    $region20: #{tpu_custom_call.1} parent=1 // pred_region
      %41 = dma.done [#allocation7], 2048
    $region21: #{tpu_custom_call.1} parent=1 // pred_fallthru
      _
    %v42 = vld [vmem:[#allocation3] sm:$0xff]
    %v43 = vld [vmem:[#allocation6] sm:$0xff]
    %v44 = vld [vmem:[#allocation6 + $0x8] sm:$0xff]
    %v45 = vld [vmem:[#allocation6 + $0x10] sm:$0xff]
    %v46 = vld [vmem:[#allocation6 + $0x18] sm:$0xff]
    %v47 = vld [vmem:[#allocation6 + $0x20] sm:$0xff]
    %v48 = vld [vmem:[#allocation6 + $0x28] sm:$0xff]
    %v49 = vld [vmem:[#allocation6 + $0x30] sm:$0xff]
    %v50 = vld [vmem:[#allocation6 + $0x38] sm:$0xff]
    %v51 = vld [vmem:[#allocation6 + $0x40] sm:$0xff]
    %v52 = vld [vmem:[#allocation6 + $0x48] sm:$0xff]
    %v53 = vld [vmem:[#allocation6 + $0x50] sm:$0xff]
    %v54 = vld [vmem:[#allocation6 + $0x58] sm:$0xff]
    %v55 = vld [vmem:[#allocation6 + $0x60] sm:$0xff]
    %v56 = vld [vmem:[#allocation6 + $0x68] sm:$0xff]
    %v57 = vld [vmem:[#allocation6 + $0x70] sm:$0xff]
    %v58 = vld [vmem:[#allocation6 + $0x78] sm:$0xff]
    %s59 = sld [smem:[#allocation2]]
    %v60 = vstv %s59
    %vm61 = vcmask 261120
    %v63 = vsel %vm61, %v42, 0
    %65 = vmatprep.subr.mxu0 %v44
    %66 = vmatpush1.msra.mxu0 %v43
    %67 = vmatprep.subr.mxu0 %v48
    %68 = vmatpush1.msra.mxu0 %v47
    %69 = vmatprep.subr.mxu0 %v52
    %70 = vmatpush1.msra.mxu0 %v51
    %71 = vmatprep.subr.mxu0 %v56
    %72 = vmatpush1.msra.mxu0 %v55
    %73 = vmatprep.subr.mxu0 0.0
    %74 = vmatpush1.msra.mxu0 0.0
    %75 = vmatprep.subr.mxu0 0.0
    %76 = vmatpush1.msra.mxu0 0.0
    %77 = vmatprep.subr.mxu0 0.0
    %78 = vmatpush1.msra.mxu0 0.0
    %79 = vmatprep.subr.mxu0 0.0
    %80 = vmatpush1.msra.mxu0 0.0
    %81 = vmatprep.subr.mxu0 0.0
    %82 = vmatpush1.msra.mxu0 0.0
    %83 = vmatprep.subr.mxu0 0.0
    %84 = vmatpush1.msra.mxu0 0.0
    %85 = vmatprep.subr.mxu0 0.0
    %86 = vmatpush1.msra.mxu0 0.0
    %87 = vmatprep.subr.mxu0 0.0
    %88 = vmatpush1.msra.mxu0 0.0
    %89 = vmatprep.subr.mxu0 0.0
    %90 = vmatpush1.msra.mxu0 0.0
    %91 = vmatprep.subr.mxu0 0.0
    %92 = vmatpush1.msra.mxu0 0.0
    %93 = vmatprep.subr.mxu0 0.0
    %94 = vmatpush1.msra.mxu0 0.0
    %95 = vmatprep.subr.mxu0 0.0
    %96 = vmatpush1.msra.mxu0 0.0
    %97 = vmatprep.subr.mxu0 0.0
    %98 = vmatpush1.msra.mxu0 0.0
    %99 = vmatprep.subr.mxu0 0.0
    %100 = vmatpush1.msra.mxu0 0.0
    %101 = vmatprep.subr.mxu0 0.0
    %102 = vmatpush1.msra.mxu0 0.0
    %103 = vmatprep.subr.mxu0 0.0
    %104 = vmatpush1.msra.mxu0 0.0
    %105 = vmatprep.subr.mxu0 0.0
    %106 = vmatpush1.msra.mxu0 0.0
    %107 = vmatprep.subr.mxu0 0.0
    %108 = vmatpush1.msra.mxu0 0.0
    %109 = vmatprep.subr.mxu0 0.0
    %110 = vmatpush1.msra.mxu0 0.0
    %111 = vmatprep.subr.mxu0 0.0
    %112 = vmatpush1.msra.mxu0 0.0
    %113 = vmatprep.subr.mxu0 0.0
    %114 = vmatpush1.msra.mxu0 0.0
    %115 = vmatprep.subr.mxu0 0.0
    %116 = vmatpush1.msra.mxu0 0.0
    %117 = vmatprep.subr.mxu0 0.0
    %118 = vmatpush1.msra.mxu0 0.0
    %119 = vmatprep.subr.mxu0 0.0
    %120 = vmatpush1.msra.mxu0 0.0
    %121 = vmatprep.subr.mxu0 0.0
    %122 = vmatpush1.msra.mxu0 0.0
    %123 = vmatprep.subr.mxu0 0.0
    %124 = vmatpush1.msra.mxu0 0.0
    %125 = vmatprep.subr.mxu0 0.0
    %126 = vmatpush1.msra.mxu0 0.0
    %127 = vmatprep.subr.mxu0 0.0
    %128 = vmatpush1.msra.mxu0 0.0
    %129 = vmatprep.mubr.f32.mxu0 0.0
    %130 = vmatmul.mubr.f32.gmra.mrb[0].mxu0 %v63
    %v131 = vpop.f32.mrb[0].mxu0
    %v132 = vadd.f32 %v60, %v131
    %v133 = vpop.f32.mrb[0].mxu0
    %v134 = vadd.f32 %v60, %v133
    %135 = vdwg.mxu0
    %136 = vmatprep.subr.mxu0 %v46
    %137 = vmatpush1.msra.mxu0 %v45
    %138 = vmatprep.subr.mxu0 %v50
    %139 = vmatpush1.msra.mxu0 %v49
    %140 = vmatprep.subr.mxu0 %v54
    %141 = vmatpush1.msra.mxu0 %v53
    %142 = vmatprep.subr.mxu0 %v58
    %143 = vmatpush1.msra.mxu0 %v57
    %144 = vmatprep.subr.mxu0 0.0
    %145 = vmatpush1.msra.mxu0 0.0
    %146 = vmatprep.subr.mxu0 0.0
    %147 = vmatpush1.msra.mxu0 0.0
    %148 = vmatprep.subr.mxu0 0.0
    %149 = vmatpush1.msra.mxu0 0.0
    %150 = vmatprep.subr.mxu0 0.0
    %151 = vmatpush1.msra.mxu0 0.0
    %152 = vmatprep.subr.mxu0 0.0
    %153 = vmatpush1.msra.mxu0 0.0
    %154 = vmatprep.subr.mxu0 0.0
    %155 = vmatpush1.msra.mxu0 0.0
    %156 = vmatprep.subr.mxu0 0.0
    %157 = vmatpush1.msra.mxu0 0.0
    %158 = vmatprep.subr.mxu0 0.0
    %159 = vmatpush1.msra.mxu0 0.0
    %160 = vmatprep.subr.mxu0 0.0
    %161 = vmatpush1.msra.mxu0 0.0
    %162 = vmatprep.subr.mxu0 0.0
    %163 = vmatpush1.msra.mxu0 0.0
    %164 = vmatprep.subr.mxu0 0.0
    %165 = vmatpush1.msra.mxu0 0.0
    %166 = vmatprep.subr.mxu0 0.0
    %167 = vmatpush1.msra.mxu0 0.0
    %168 = vmatprep.subr.mxu0 0.0
    %169 = vmatpush1.msra.mxu0 0.0
    %170 = vmatprep.subr.mxu0 0.0
    %171 = vmatpush1.msra.mxu0 0.0
    %172 = vmatprep.subr.mxu0 0.0
    %173 = vmatpush1.msra.mxu0 0.0
    %174 = vmatprep.subr.mxu0 0.0
    %175 = vmatpush1.msra.mxu0 0.0
    %176 = vmatprep.subr.mxu0 0.0
    %177 = vmatpush1.msra.mxu0 0.0
    %178 = vmatprep.subr.mxu0 0.0
    %179 = vmatpush1.msra.mxu0 0.0
    %180 = vmatprep.subr.mxu0 0.0
    %181 = vmatpush1.msra.mxu0 0.0
    %182 = vmatprep.subr.mxu0 0.0
    %183 = vmatpush1.msra.mxu0 0.0
    %184 = vmatprep.subr.mxu0 0.0
    %185 = vmatpush1.msra.mxu0 0.0
    %186 = vmatprep.subr.mxu0 0.0
    %187 = vmatpush1.msra.mxu0 0.0
    %188 = vmatprep.subr.mxu0 0.0
    %189 = vmatpush1.msra.mxu0 0.0
    %190 = vmatprep.subr.mxu0 0.0
    %191 = vmatpush1.msra.mxu0 0.0
    %192 = vmatprep.subr.mxu0 0.0
    %193 = vmatpush1.msra.mxu0 0.0
    %194 = vmatprep.subr.mxu0 0.0
    %195 = vmatpush1.msra.mxu0 0.0
    %196 = vmatprep.subr.mxu0 0.0
    %197 = vmatpush1.msra.mxu0 0.0
    %198 = vmatprep.subr.mxu0 0.0
    %199 = vmatpush1.msra.mxu0 0.0
    %200 = vmatprep.mubr.f32.mxu0 0.0
    %201 = vmatmul.mubr.f32.gmra.mrb[0].mxu0 %v63
    %v202 = vpop.f32.mrb[0].mxu0
    %v203 = vadd.f32 %v60, %v202
    %v204 = vpop.f32.mrb[0].mxu0
    %v205 = vadd.f32 %v60, %v204
    %206 = vdwg.mxu0
    %207 = vst [vmem:[#allocation8] sm:$0xff] %v132
    %208 = vst [vmem:[#allocation8 + $0x8] sm:$0xff] %v134
    %209 = vst [vmem:[#allocation8 + $0x10] sm:$0xff] %v203
    %210 = vst [vmem:[#allocation8 + $0x18] sm:$0xff] %v205
    // Predicated region
    $region22: #{tpu_custom_call.1} parent=1 // pred_check
      _
    $region23: #{tpu_custom_call.1} parent=1 // pred_check_branch
      %212 = sbr.rel (0) target = $region25
    $region24: #{tpu_custom_call.1} parent=1 // pred_region
      %s214 = ssub.s32 512, 512
      %215 = vsyncadd [#allocation5], %s214
      %s217 = sshll.u32 [#allocation8], 4
      %s218 = int_to_ptr.vmem [resolvable:$true] %s217
      %220 = dma.vmem_to_hbm [thread:$0]  %s218, 512, %s3, [#allocation5]
    $region25: #{tpu_custom_call.1} parent=1 // pred_fallthru
      _
    // Predicated region
    $region26: #{tpu_custom_call.1} parent=1 // pred_check
      _
    $region27: #{tpu_custom_call.1} parent=1 // pred_check_branch
      %222 = sbr.rel (0) target = $region29
    $region28: #{tpu_custom_call.1} parent=1 // pred_region
      %223 = dma.done [#allocation5], 512
    $region29: #{tpu_custom_call.1} parent=1 // pred_fallthru
      _
    %224 = vsyncpa [#allocation4], 1
    %225 = vsyncpa [#allocation7], 1
    %226 = vsyncpa [#allocation5], 1

</llo_original>
